<compile_context>
chip_gen: v5e
topology: v5e:2x2
jax: 0.10.0
libtpu: 0.0.40
codegen_flags: <defaults>
</compile_context>

<pallas_src>
import functools

import jax
import jax.numpy as jnp
from jax.experimental import pallas as pl
from jax.experimental.pallas import tpu as pltpu


def _round_up(x, m):
    return (x + m - 1) // m * m


def at_loss_kernel(logits_ref, labels_ref, loss_ref):
    logits = logits_ref[...].astype(jnp.float32)
    labels = labels_ref[...].astype(jnp.float32)

    col = jax.lax.broadcasted_iota(jnp.int32, logits.shape, dimension=1)
    is_th = col == 0                         # threshold column (class 0)

    # torch: labels[:, 0] = 0.0
    labels = jnp.where(is_th, 0.0, labels)
    pos = labels > 0.0                       # positive classes (binary labels)

    p_mask = jnp.logical_or(pos, is_th)      # positives + threshold class
    n_mask = jnp.logical_not(pos)            # threshold + negatives

    # Shared row-max / single exp pass feeds both masked log-sum-exps
    # (halves EUP transcendental work vs two log_softmaxes).
    m = jnp.max(logits, axis=-1, keepdims=True)                 # XLU reduce 1
    e = jnp.exp(logits - m)                                     # EUP (e <= 1)

    zero = jnp.float32(0.0)
    # Smallest normal f32: clamps a masked sum that underflowed (all of that
    # mask's logits >~87 below the global row max) so log() stays finite.
    tiny = jnp.float32(1.1754944e-38)
    s1 = jnp.maximum(
        jnp.sum(jnp.where(p_mask, e, zero), axis=-1, keepdims=True), tiny)  # XLU 2
    s2 = jnp.maximum(
        jnp.sum(jnp.where(n_mask, e, zero), axis=-1, keepdims=True), tiny)  # XLU 3
    lse1 = m + jnp.log(s1)
    lse2 = m + jnp.log(s2)

    # loss1 = -sum_j labels_j * (logits_j - lse1), fused into one reduce.
    loss1 = jnp.sum(labels * (lse1 - logits), axis=-1, keepdims=True)       # XLU 4
    # loss2 = lse2 - logits[:, 0]; threshold logit via a lane-0 slice (no reduce).
    loss2 = lse2 - logits[:, 0:1]

    loss_ref[...] = loss1 + loss2


def _sublane_min(dtype):
    # Minimum second-to-last block dim per dtype: f32 -> 8, bf16 -> 16, i8/bool -> 32.
    return max(8, 32 // jnp.dtype(dtype).itemsize)


@functools.partial(jax.jit, static_argnames=("row_tile",))
def at_loss(logits, labels, row_tile=1024):
    """Pallas ATLoss forward.

    logits, labels: (N, C).  labels are binary multi-label targets; class 0 is
    the threshold class.  Returns a scalar f32 loss (mean over the batch).

    Inputs may be stored narrow (bf16 logits, int8/bool labels) to cut HBM read
    traffic ~2.6x; the kernel upcasts to f32 internally.  `row_tile` is the
    number of batch rows processed per grid step; it is additionally capped so
    the double-buffered input footprint stays under ~8 MiB of VMEM (safe on the
    v5e 16-MiB scoped default and v7x's 64-MiB physical / 32-MiB scoped VMEM).
    """
    n, c = logits.shape
    assert labels.shape == (n, c), (logits.shape, labels.shape)

    row_min = max(_sublane_min(logits.dtype), _sublane_min(labels.dtype))

    # Pad rows only to the dtype sublane minimum (usually a no-op).  The ragged
    # last grid block is boundary-handled by Pallas, so no pad to a multiple of
    # the tile (and no extra full-array HBM copy) is needed.
    n_pad = _round_up(n, row_min)
    if n_pad != n:
        pad = n_pad - n
        logits = jnp.pad(logits, ((0, pad), (0, 0)))
        labels = jnp.pad(labels, ((0, pad), (0, 0)))

    # VMEM budget for the two double-buffered input blocks.
    bytes_per_row = c * (jnp.dtype(logits.dtype).itemsize
                         + jnp.dtype(labels.dtype).itemsize)
    vmem_budget = 8 * 1024 * 1024
    max_tile = max(row_min, (vmem_budget // (2 * bytes_per_row)) // row_min * row_min)

    tile = min(row_tile, max_tile, n_pad)
    tile = max(row_min, tile // row_min * row_min)
    grid = pl.cdiv(n_pad, tile)
    # Prefer >= 2 grid steps so the row axis can shard across both TensorCores
    # on v7x; costs at most one extra ~0.35 us step elsewhere.
    if grid < 2 and n_pad >= 2 * row_min:
        tile = _round_up(pl.cdiv(n_pad, 2), row_min)
        grid = pl.cdiv(n_pad, tile)

    per_row = pl.pallas_call(
        at_loss_kernel,
        out_shape=jax.ShapeDtypeStruct((n_pad, 1), jnp.float32),
        grid_spec=pltpu.PrefetchScalarGridSpec(
            num_scalar_prefetch=0,
            grid=(grid,),
            in_specs=[
                pl.BlockSpec((tile, c), lambda i: (i, 0)),
                pl.BlockSpec((tile, c), lambda i: (i, 0)),
            ],
            out_specs=pl.BlockSpec((tile, 1), lambda i: (i, 0)),
        ),
        compiler_params=pltpu.CompilerParams(
            # Row axis is embarrassingly parallel -> megacore sharding on v7x.
            dimension_semantics=("parallel",)),
    )(logits, labels)

    # Mean over the *original* rows.  Rows >= n (sublane padding, or garbage in
    # a ragged tail block) are sliced off here — keep this slice.
    return jnp.sum(per_row[:n, 0]) / jnp.float32(n)


def at_loss_reference(logits, labels):
    """Pure-JAX reference matching the torch forward, for sanity checking."""
    logits = logits.astype(jnp.float32)
    labels = labels.astype(jnp.float32)
    th_label = jnp.zeros_like(labels).at[:, 0].set(1.0)
    labels = labels.at[:, 0].set(0.0)
    p_mask = labels + th_label
    n_mask = 1.0 - labels
    logit1 = logits - (1.0 - p_mask) * 1e30
    loss1 = -jnp.sum(jax.nn.log_softmax(logit1, axis=-1) * labels, axis=1)
    logit2 = logits - (1.0 - n_mask) * 1e30
    loss2 = -jnp.sum(jax.nn.log_softmax(logit2, axis=-1) * th_label, axis=1)
    return jnp.mean(loss1 + loss2)


# TODO(synk): ATLoss.get_label (inference-time thresholding/top-k) is not part of
# the forward pass and is not implemented here.

if __name__ == "__main__":
    key = jax.random.PRNGKey(0)

    def make(k, n, c):
        k1, k2 = jax.random.split(k)
        logits = jax.random.normal(k1, (n, c), dtype=jnp.float32)
        labels = (jax.random.uniform(k2, (n, c)) < 0.05).astype(jnp.float32)
        return logits, labels

    C = 128

    # --- small primary test: N=16 rows, C=128 classes (class 0 = threshold) ---
    k1, key = jax.random.split(key)
    logits, labels = make(k1, 16, C)
    loss = at_loss(logits, labels)
    jax.block_until_ready(loss)
    ref = at_loss_reference(logits, labels)
    assert jnp.allclose(loss, ref, rtol=1e-4, atol=1e-4), (loss, ref)

    # --- multi-step + ragged last block (tile does not divide N; no full pad) ---
    k2, key = jax.random.split(key)
    logits2, labels2 = make(k2, 256, C)
    loss2 = at_loss(logits2, labels2, row_tile=96)   # grid of 3, last block ragged
    jax.block_until_ready(loss2)
    ref2 = at_loss_reference(logits2, labels2)
    assert jnp.allclose(loss2, ref2, rtol=1e-4, atol=1e-4), (loss2, ref2)

    # --- batch not a multiple of 8: exercises the small sublane pad (20 -> 24) ---
    k3, key = jax.random.split(key)
    logits3, labels3 = make(k3, 20, C)
    loss3 = at_loss(logits3, labels3)
    jax.block_until_ready(loss3)
    ref3 = at_loss_reference(logits3, labels3)
    assert jnp.allclose(loss3, ref3, rtol=1e-4, atol=1e-4), (loss3, ref3)

    # --- narrow-dtype inputs: bf16 logits + int8 labels (kernel upcasts to f32) ---
    k4, key = jax.random.split(key)
    logits4_f32, labels4_f32 = make(k4, 100, C)
    logits4 = logits4_f32.astype(jnp.bfloat16)
    labels4 = labels4_f32.astype(jnp.int8)
    loss4 = at_loss(logits4, labels4)
    jax.block_until_ready(loss4)
    ref4 = at_loss_reference(logits4.astype(jnp.float32),
                             labels4.astype(jnp.float32))
    assert jnp.allclose(loss4, ref4, rtol=1e-3, atol=1e-3), (loss4, ref4)

    print("KERNEL_OK")
</pallas_src>

<mosaic_0001>
module attributes {stable_mosaic.version = 11 : i64} {
  func.func @at_loss_kernel(%arg0: i32, %arg1: memref<8x128xf32, #tpu.memory_space<vmem>>, %arg2: memref<8x128xf32, #tpu.memory_space<vmem>>, %arg3: memref<8x1xf32, #tpu.memory_space<vmem>>) attributes {dimension_semantics = [#tpu.dimension_semantics<parallel>], iteration_bounds = array<i64: 2>, scalar_prefetch = 0 : i64, scratch_operands = 0 : i64, tpu.core_type = #tpu.core_type<tc>, window_params = [{transform_indices = @transform_0, window_bounds = array<i64: 8, 128>}, {transform_indices = @transform_1, window_bounds = array<i64: 8, 128>}, {transform_indices = @transform_2, window_bounds = array<i64: 8, 1>}]} {
    %c0 = arith.constant 0 : index
    %c0_0 = arith.constant 0 : index
    %0 = vector.load %arg1[%c0, %c0_0] : memref<8x128xf32, #tpu.memory_space<vmem>>, vector<8x128xf32>
    %c0_1 = arith.constant 0 : index
    %c0_2 = arith.constant 0 : index
    %1 = vector.load %arg2[%c0_1, %c0_2] : memref<8x128xf32, #tpu.memory_space<vmem>>, vector<8x128xf32>
    %2 = tpu.iota {dimensions = array<i32: 1>} : vector<8x128xi32>
    %c0_i32 = arith.constant 0 : i32
    %3 = vector.broadcast %c0_i32 : i32 to vector<8x128xi32>
    %4 = arith.cmpi eq, %2, %3 : vector<8x128xi32>
    %cst = arith.constant 0.000000e+00 : f32
    %5 = vector.broadcast %cst : f32 to vector<8x128xf32>
    %6 = arith.select %4, %5, %1 : vector<8x128xi1>, vector<8x128xf32>
    %cst_3 = arith.constant 0.000000e+00 : f32
    %7 = vector.broadcast %cst_3 : f32 to vector<8x128xf32>
    %8 = arith.cmpf ogt, %6, %7 : vector<8x128xf32>
    %9 = arith.ori %8, %4 : vector<8x128xi1>
    %cst_4 = arith.constant dense<true> : vector<8x128xi1>
    %10 = arith.xori %8, %cst_4 : vector<8x128xi1>
    %cst_5 = arith.constant dense<0xFF800000> : vector<8xf32>
    %11 = vector.multi_reduction <maximumf>, %0, %cst_5 [1] : vector<8x128xf32> to vector<8xf32>
    %12 = vector.shape_cast %11 : vector<8xf32> to vector<8x1xf32>
    %13 = vector.broadcast %12 : vector<8x1xf32> to vector<8x128xf32>
    %14 = arith.subf %0, %13 : vector<8x128xf32>
    %15 = math.exp %14 : vector<8x128xf32>
    %cst_6 = arith.constant 0.000000e+00 : f32
    %16 = vector.broadcast %cst_6 : f32 to vector<8x128xf32>
    %17 = arith.select %9, %15, %16 : vector<8x128xi1>, vector<8x128xf32>
    %cst_7 = arith.constant dense<0.000000e+00> : vector<8xf32>
    %18 = vector.multi_reduction <add>, %17, %cst_7 [1] : vector<8x128xf32> to vector<8xf32>
    %19 = vector.shape_cast %18 : vector<8xf32> to vector<8x1xf32>
    %cst_8 = arith.constant 1.17549435E-38 : f32
    %20 = vector.broadcast %cst_8 : f32 to vector<8x1xf32>
    %21 = arith.maximumf %19, %20 : vector<8x1xf32>
    %cst_9 = arith.constant 0.000000e+00 : f32
    %22 = vector.broadcast %cst_9 : f32 to vector<8x128xf32>
    %23 = arith.select %10, %15, %22 : vector<8x128xi1>, vector<8x128xf32>
    %cst_10 = arith.constant dense<0.000000e+00> : vector<8xf32>
    %24 = vector.multi_reduction <add>, %23, %cst_10 [1] : vector<8x128xf32> to vector<8xf32>
    %25 = vector.shape_cast %24 : vector<8xf32> to vector<8x1xf32>
    %cst_11 = arith.constant 1.17549435E-38 : f32
    %26 = vector.broadcast %cst_11 : f32 to vector<8x1xf32>
    %27 = arith.maximumf %25, %26 : vector<8x1xf32>
    %28 = math.log %21 : vector<8x1xf32>
    %29 = arith.addf %12, %28 : vector<8x1xf32>
    %30 = math.log %27 : vector<8x1xf32>
    %31 = arith.addf %12, %30 : vector<8x1xf32>
    %32 = vector.broadcast %29 : vector<8x1xf32> to vector<8x128xf32>
    %33 = arith.subf %32, %0 : vector<8x128xf32>
    %34 = arith.mulf %6, %33 : vector<8x128xf32>
    %cst_12 = arith.constant dense<0.000000e+00> : vector<8xf32>
    %35 = vector.multi_reduction <add>, %34, %cst_12 [1] : vector<8x128xf32> to vector<8xf32>
    %36 = vector.shape_cast %35 : vector<8xf32> to vector<8x1xf32>
    %37 = vector.extract_strided_slice %0 {offsets = [0, 0], sizes = [8, 1], strides = [1, 1]} : vector<8x128xf32> to vector<8x1xf32>
    %38 = arith.subf %31, %37 : vector<8x1xf32>
    %39 = arith.addf %36, %38 : vector<8x1xf32>
    %c0_13 = arith.constant 0 : index
    %c0_14 = arith.constant 0 : index
    %40 = vector.load %arg3[%c0_13, %c0_14] : memref<8x1xf32, #tpu.memory_space<vmem>>, vector<8x1xf32>
    tpu.vector_store %arg3[%c0_13, %c0_14], %39 {strides = array<i32>} : memref<8x1xf32, #tpu.memory_space<vmem>>, vector<8x1xf32>,
    return
  }
  func.func @transform_0(%arg0: i32) -> (i32, i32) {
    %c0_i32 = arith.constant 0 : i32
    %c0_i32_0 = arith.constant 0 : i32
    return %arg0, %c0_i32 : i32, i32
  }
  func.func @transform_1(%arg0: i32) -> (i32, i32) {
    %c0_i32 = arith.constant 0 : i32
    %c0_i32_0 = arith.constant 0 : i32
    return %arg0, %c0_i32 : i32, i32
  }
  func.func @transform_2(%arg0: i32) -> (i32, i32) {
    %c0_i32 = arith.constant 0 : i32
    %c0_i32_0 = arith.constant 0 : i32
    return %arg0, %c0_i32 : i32, i32
  }
}

</mosaic_0001>

<llo_original>
// kernel: at_loss.1
$region0: #{at_loss.1}
  #allocation0 [shape = 'u32[]', space=smem, size = 0x4, offset = 0x4, fixed_abs, tag = 'smem constant byte address 0x4 - core index']
  #allocation1 [shape = 'u32[72,128]{1,0:T(1,128)}', space=vmem, size = 0x9000, scoped, tag = 'internal scratch']
  %s0 = inlined_call_operand.hbm [shape: f32[16,128], index: 0, kind: input, shape index: {}]
  %s1 = inlined_call_operand.hbm [shape: f32[16,128], index: 1, kind: input, shape index: {}]
  %s2 = inlined_call_operand.vmem [shape: f32[16,1], index: 2, kind: output, shape index: {}]
  %s3 = sld [smem:[#allocation0]]
  $region49: #{at_loss.1} parent=0
    _
  %s5 = ssub.s32 1, %s3
  %s6 = scalar_select 0, %s5, %s3
  $region1: #{at_loss.1} parent=0
    #allocation2 [shape = 'u8[8192]{0}', space=vmem, size = 0x2000, scoped, tag = 'input window, operand 0']
    #allocation3 [shape = 's32[2]{0}', space=sflag, size = 0x8, scoped, tag = 'scoped memory for at_loss.1']
    #allocation4 [shape = 'u8[8192]{0}', space=vmem, size = 0x2000, scoped, tag = 'input window, operand 1']
    #allocation5 [shape = 's32[2]{0}', space=sflag, size = 0x8, scoped, tag = 'scoped memory for at_loss.1']
    %7 = vsyncpa [#allocation3], 0
    %s8 = scalar_lea.sflag [#allocation3], 1
    %9 = vsyncpa %s8, 0
    %10 = vsyncpa [#allocation5], 0
    %s11 = scalar_lea.sflag [#allocation5], 1
    %12 = vsyncpa %s11, 0
    loop: start=0, step=1, limit=4
    $region2: #{at_loss.1} parent=1 // loop_pre_header
      _
    $region3: #{at_loss.1} parent=1 // loop_header
      %s14 = sphi 0, %s18
      %p15 = scmp.ge.s32.totalorder %s14, 4
      %s24 = sphi 0, %s26
      %s27 = sphi 0, %s24
      %s28 = sphi 0, %s27
      %s44 = sphi 0, %s28
      %s50 = sphi 0, %s52
      %s53 = sphi 0, %s50
      %s54 = sphi 0, %s53
      %s70 = sphi 0, %s54
      %s76 = sphi 0, %s78
      %s79 = sphi 0, %s76
      %s80 = sphi 0, %s79
      %s96 = sphi 0, %s80
    $region4: #{at_loss.1} parent=1 // loop_header_branch
      %17 = sbr.rel (%p15) target = $region8
    $region5: #{at_loss.1} parent=1 // loop_body
      %s19 = ssub.s32 %s14, 1
      %s20 = ssub.s32 %s14, 2
      %s21 = sadd.s32 %s14, 1
      %s22 = ssub.s32 %s14, %s21
      %p23 = scmp.eq.s32.totalorder %s22, 0
      %s25 = sadd.s32 %s24, 1
      %s26 = scalar_select %p23, %s24, %s25
      %p29 = pneg %p23
      %p30 = scmp.eq.s32.totalorder %s14, 1
      %p31 = por %p29, %p30
      %p32 = scmp.ne.s32.totalorder %s24, %s27
      %p33 = scmp.eq.s32.totalorder %s14, 0
      %p34 = por %p32, %p33
      %p35 = scmp.ne.s32.totalorder %s24, %s27
      %p36 = scmp.eq.s32.totalorder %s19, 1
      %p37 = por %p35, %p36
      %p38 = scmp.ne.s32.totalorder %s27, %s28
      %p39 = scmp.eq.s32.totalorder %s19, 0
      %p40 = por %p38, %p39
      %p41 = scmp.ne.s32.totalorder %s27, %s28
      %p42 = scmp.eq.s32.totalorder %s20, 1
      %p43 = por %p41, %p42
      %p45 = scmp.ne.s32.totalorder %s28, %s44
      %p46 = scmp.eq.s32.totalorder %s20, 0
      %p47 = por %p45, %p46
      %s48 = ssub.s32 %s14, %s21
      %p49 = scmp.eq.s32.totalorder %s48, 0
      %s51 = sadd.s32 %s50, 1
      %s52 = scalar_select %p49, %s50, %s51
      %p55 = pneg %p49
      %p56 = scmp.eq.s32.totalorder %s14, 1
      %p57 = por %p55, %p56
      %p58 = scmp.ne.s32.totalorder %s50, %s53
      %p59 = scmp.eq.s32.totalorder %s14, 0
      %p60 = por %p58, %p59
      %p61 = scmp.ne.s32.totalorder %s50, %s53
      %p62 = scmp.eq.s32.totalorder %s19, 1
      %p63 = por %p61, %p62
      %p64 = scmp.ne.s32.totalorder %s53, %s54
      %p65 = scmp.eq.s32.totalorder %s19, 0
      %p66 = por %p64, %p65
      %p67 = scmp.ne.s32.totalorder %s53, %s54
      %p68 = scmp.eq.s32.totalorder %s20, 1
      %p69 = por %p67, %p68
      %p71 = scmp.ne.s32.totalorder %s54, %s70
      %p72 = scmp.eq.s32.totalorder %s20, 0
      %p73 = por %p71, %p72
      %s74 = ssub.s32 %s14, %s21
      %p75 = scmp.eq.s32.totalorder %s74, 0
      %s77 = sadd.s32 %s76, 1
      %s78 = scalar_select %p75, %s76, %s77
      %p81 = pneg %p75
      %p82 = scmp.eq.s32.totalorder %s14, 1
      %p83 = por %p81, %p82
      %p84 = scmp.ne.s32.totalorder %s76, %s79
      %p85 = scmp.eq.s32.totalorder %s14, 0
      %p86 = por %p84, %p85
      %p87 = scmp.ne.s32.totalorder %s76, %s79
      %p88 = scmp.eq.s32.totalorder %s19, 1
      %p89 = por %p87, %p88
      %p90 = scmp.ne.s32.totalorder %s79, %s80
      %p91 = scmp.eq.s32.totalorder %s19, 0
      %p92 = por %p90, %p91
      %p93 = scmp.ne.s32.totalorder %s79, %s80
      %p94 = scmp.eq.s32.totalorder %s20, 1
      %p95 = por %p93, %p94
      %p97 = scmp.ne.s32.totalorder %s80, %s96
      %p98 = scmp.eq.s32.totalorder %s20, 0
      %p99 = por %p97, %p98
      %p100 = scmp.le.s32.totalorder 1, %s14
      %p101 = scmp.lt.s32.totalorder %s14, 3
      %p102 = pnand %p100, %p101
      %p103 = pneg %p102
      // Predicated region
      $region9: #{at_loss.1} parent=5 // pred_check
        _
      $region10: #{at_loss.1} parent=5 // pred_check_branch
        %105 = sbr.rel (%p102) target = $region12
      $region11: #{at_loss.1} parent=5 // pred_region
        %s106 = ssub.s32 %s14, 1
      $region12: #{at_loss.1} parent=5 // pred_fallthru
        _
      %p107 = scmp.lt.s32.totalorder %s14, 2
      // Predicated region
      $region13: #{at_loss.1} parent=5 // pred_check
        %p108 = pneg %p107
      $region14: #{at_loss.1} parent=5 // pred_check_branch
        %110 = sbr.rel (%p108) target = $region16
      $region15: #{at_loss.1} parent=5 // pred_region
        // Predicated region
        $region17: #{at_loss.1} parent=15 // pred_check
          %p111 = pneg %p34
        $region18: #{at_loss.1} parent=15 // pred_check_branch
          %113 = sbr.rel (%p111) target = $region20
        $region19: #{at_loss.1} parent=15 // pred_region
          %s114 = sand.u32 %s24, 1
          %s115 = scalar_lea.sflag [#allocation3], %s114
          %s116 = sand.u32 %s24, 1
          %s117 = smul.addr %s116, 8
          %s118 = scalar_lea.vmem [#allocation2], %s117
          %120 = vsyncadd %s115, 0
          %s121 = smul.addr %s14, 8
          %s122 = scalar_lea.hbm %s0, %s121
          %s124 = sshll.u32 %s122, 4
          %s125 = int_to_ptr.hbm [resolvable:$true] %s124
          %s126 = sshll.u32 %s118, 4
          %s127 = int_to_ptr.vmem [resolvable:$true] %s126
          %129 = dma.hbm_to_vmem [thread:$0]  %s125, 128, %s127, %s115
        $region20: #{at_loss.1} parent=15 // pred_fallthru
          _
        // Predicated region
        $region21: #{at_loss.1} parent=15 // pred_check
          %p130 = pneg %p60
        $region22: #{at_loss.1} parent=15 // pred_check_branch
          %132 = sbr.rel (%p130) target = $region24
        $region23: #{at_loss.1} parent=15 // pred_region
          %s133 = sand.u32 %s50, 1
          %s134 = scalar_lea.sflag [#allocation5], %s133
          %s135 = sand.u32 %s50, 1
          %s136 = smul.addr %s135, 8
          %s137 = scalar_lea.vmem [#allocation4], %s136
          %139 = vsyncadd %s134, 0
          %s140 = smul.addr %s14, 8
          %s141 = scalar_lea.hbm %s1, %s140
          %s143 = sshll.u32 %s141, 4
          %s144 = int_to_ptr.hbm [resolvable:$true] %s143
          %s145 = sshll.u32 %s137, 4
          %s146 = int_to_ptr.vmem [resolvable:$true] %s145
          %148 = dma.hbm_to_vmem [thread:$0]  %s144, 128, %s146, %s134
        $region24: #{at_loss.1} parent=15 // pred_fallthru
          _
      $region16: #{at_loss.1} parent=5 // pred_fallthru
        _
      %p149 = scmp.le.s32.totalorder 1, %s14
      %p150 = scmp.lt.s32.totalorder %s14, 3
      %p151 = pnand %p149, %p150
      %p152 = pneg %p151
      // Predicated region
      $region25: #{at_loss.1} parent=5 // pred_check
        _
      $region26: #{at_loss.1} parent=5 // pred_check_branch
        %154 = sbr.rel (%p151) target = $region28
      $region27: #{at_loss.1} parent=5 // pred_region
        %s155 = ssub.s32 %s14, 1
        %s156 = sand.u32 %s27, 1
        %s157 = scalar_lea.sflag [#allocation3], %s156
        %s158 = sand.u32 %s27, 1
        %s159 = smul.addr %s158, 8
        %s160 = scalar_lea.vmem [#allocation2], %s159
        // Predicated region
        $region29: #{at_loss.1} parent=27 // pred_check
          %p161 = pneg %p40
        $region30: #{at_loss.1} parent=27 // pred_check_branch
          %163 = sbr.rel (%p161) target = $region32
        $region31: #{at_loss.1} parent=27 // pred_region
          %165 = dma.done %s157, 128
        $region32: #{at_loss.1} parent=27 // pred_fallthru
          _
        %s166 = sand.u32 %s53, 1
        %s167 = scalar_lea.sflag [#allocation5], %s166
        %s168 = sand.u32 %s53, 1
        %s169 = smul.addr %s168, 8
        %s170 = scalar_lea.vmem [#allocation4], %s169
        // Predicated region
        $region33: #{at_loss.1} parent=27 // pred_check
          %p171 = pneg %p66
        $region34: #{at_loss.1} parent=27 // pred_check_branch
          %173 = sbr.rel (%p171) target = $region36
        $region35: #{at_loss.1} parent=27 // pred_region
          %175 = dma.done %s167, 128
        $region36: #{at_loss.1} parent=27 // pred_fallthru
          _
        %s176 = sand.u32 %s27, 1
        %s177 = scalar_lea.sflag [#allocation3], %s176
        %s178 = sand.u32 %s27, 1
        %s179 = smul.addr %s178, 8
        %s180 = scalar_lea.vmem [#allocation2], %s179
        %p181 = pneg %p40
        %p182 = pneg %p37
        %s183 = sand.u32 %s53, 1
        %s184 = scalar_lea.sflag [#allocation5], %s183
        %s185 = sand.u32 %s53, 1
        %s186 = smul.addr %s185, 8
        %s187 = scalar_lea.vmem [#allocation4], %s186
        %p188 = pneg %p66
        %p189 = pneg %p63
        %p190 = pneg %p92
        %p191 = pneg %p89
        %p192 = scmp.lt.s32.totalorder %s19, 1
        %s193 = scalar_select %p192, %s19, 1
        %s194 = smul.addr %s193, 8
        %s195 = scalar_lea.vmem %s2, %s194
        %p196 = scmp.lt.s32.totalorder %s19, 1
        %s197 = scalar_select %p196, %s19, 1
        %s198 = smul.addr %s197, 8
        %s199 = scalar_lea.vmem %s2, %s198
        %v200 = vld [vmem:[%s160] sm:$0xff]
        %v201 = vld [vmem:[%s170] sm:$0xff]
        %v202 = vlaneseq
        %v203 = vand.u32 %v202, 127
        %vm204 = vcmp.eq.s32.totalorder %v203, 0
        %v205 = vsel %vm204, 0.0, %v201
        %vm206 = vcmp.gt.f32.partialorder %v205, 0.0
        %vm207 = vmor %vm206, %vm204
        %vm208 = vmxor %vm206, 1
        %209 = vmax.xlane.f32.xlu0 %v200
        %v210 = vpop.xlane.xlu0 %209
        %v211 = vsub.f32 %v200, %v210
        %v212 = vmul.f32 %v211, 1.442695
        %v213 = vpow.pop %v212
        %v214 = vsel %vm207, %v213, 0.0
        %215 = vadd.xlane.f32.xlu0 %v214
        %v216 = vpop.xlane.xlu0 %215
        %v217 = vmax.f32 %v216, 1.1754944e-38
        %v218 = vsel %vm208, %v213, 0.0
        %219 = vadd.xlane.f32.xlu0 %v218
        %v220 = vpop.xlane.xlu0 %219
        %v221 = vmax.f32 %v220, 1.1754944e-38
        %v222 = vlog2.pop %v217
        %v223 = vmul.f32 %v222, 0.6931472
        %v224 = vadd.f32 %v210, %v223
        %v225 = vlog2.pop %v221
        %v226 = vmul.f32 %v225, 0.6931472
        %v227 = vadd.f32 %v210, %v226
        %v228 = vsub.f32 %v224, %v200
        %v229 = vmul.f32 %v205, %v228
        %230 = vadd.xlane.f32.xlu0 %v229
        %v231 = vpop.xlane.xlu0 %230
        %v232 = vsub.f32 %v227, %v200
        %v233 = vadd.f32 %v231, %v232
        %vm234 = vcmask 7168
        %235 = vst.msk [vmem:[%s199] sm:$0xff] %vm234, %v233
        %p236 = scmp.lt.s32.totalorder %s19, 1
        %s237 = scalar_select %p236, %s19, 1
        %s238 = smul.addr %s237, 8
        %s239 = scalar_lea.vmem %s2, %s238
        // Predicated region
        $region37: #{at_loss.1} parent=27 // pred_check
          %p240 = pneg %p89
        $region38: #{at_loss.1} parent=27 // pred_check_branch
          %242 = sbr.rel (%p240) target = $region40
        $region39: #{at_loss.1} parent=27 // pred_region
          _
        $region40: #{at_loss.1} parent=27 // pred_fallthru
          _
      $region28: #{at_loss.1} parent=5 // pred_fallthru
        _
      %p243 = scmp.le.s32.totalorder 2, %s14
      // Predicated region
      $region41: #{at_loss.1} parent=5 // pred_check
        %p244 = pneg %p243
      $region42: #{at_loss.1} parent=5 // pred_check_branch
        %246 = sbr.rel (%p244) target = $region44
      $region43: #{at_loss.1} parent=5 // pred_region
        %s247 = ssub.s32 %s14, 2
        // Predicated region
        $region45: #{at_loss.1} parent=43 // pred_check
          %p248 = pneg %p95
        $region46: #{at_loss.1} parent=43 // pred_check_branch
          %250 = sbr.rel (%p248) target = $region48
        $region47: #{at_loss.1} parent=43 // pred_region
          %p251 = scmp.lt.s32.totalorder %s20, 1
          %s252 = scalar_select %p251, %s20, 1
          %s253 = smul.addr %s252, 8
          %s254 = scalar_lea.vmem %s2, %s253
        $region48: #{at_loss.1} parent=43 // pred_fallthru
          _
      $region44: #{at_loss.1} parent=5 // pred_fallthru
        _
    $region6: #{at_loss.1} parent=1 // loop_footer
      %s18 = sadd.s32 1, %s14
    $region7: #{at_loss.1} parent=1 // loop_footer_branch
      %13 = sbr.rel target = $region3
    $region8: #{at_loss.1} parent=1 // loop_exit
      _
    %255 = vsyncpa [#allocation3], 1
    %s256 = scalar_lea.sflag [#allocation3], 1
    %257 = vsyncpa %s256, 1
    %258 = vsyncpa [#allocation5], 1
    %s259 = scalar_lea.sflag [#allocation5], 1
    %260 = vsyncpa %s259, 1

</llo_original>
